<compile_context>
chip_gen: v6e
topology: v6e:2x2x1
jax: 0.10.0
libtpu: 0.0.40
codegen_flags: <defaults>
</compile_context>

<pallas_src>
import functools
from math import ceil

import jax
import jax.numpy as jnp
import numpy as np
from jax.experimental import pallas as pl
from jax.experimental.pallas import tpu as pltpu


# ---------------------------------------------------------------------------
# Weight-only preprocessing (pure numpy; run once, outside the jitted forward).
# ---------------------------------------------------------------------------
def _reflect_src_index(L, K):
    """Padded-position -> source-position map, PyTorch pad_layer() convention."""
    if K % 2 == 0:
        pad = (K // 2, K // 2 - 1)
    else:
        pad = (K // 2, K // 2)
    pos = np.arange(-pad[0], L + pad[1])
    pos = np.abs(pos)                                   # left reflection
    pos = np.where(pos >= L, 2 * (L - 1) - pos, pos)    # right reflection
    return pos                                          # (L_pad,)


def _fold_conv_operator(w, b, L_in, stride):
    """Fold reflect-pad + stride + Conv1d weights into a dense operator.

    Per-stream flat layout is channel-major: index = c * L + p  (matches the
    PyTorch .view(B, C*L) flatten).  Returns a block-diagonal (2 streams)
    operator A2 of shape (2*C_in*L_in, 2*C_out*L_out), a flat bias
    (2*C_out*L_out,), and L_out.
    """
    w = np.asarray(w, np.float32)
    b = np.asarray(b, np.float32)
    C_out, C_in, K = w.shape
    src = _reflect_src_index(L_in, K)
    L_out = (src.shape[0] - K) // stride + 1

    # S[k, t, p] = 1  iff  reflect_pad(h)[t*stride + k] reads h[p]
    S = np.zeros((K, L_out, L_in), np.float32)
    t = np.arange(L_out)
    for k in range(K):
        S[k, t, src[t * stride + k]] = 1.0

    # A[c*L_in + p, d*L_out + t] = sum_k w[d, c, k] * S[k, t, p]
    A = np.einsum("dck,ktp->cpdt", w, S).reshape(C_in * L_in, C_out * L_out)

    A2 = np.zeros((2 * C_in * L_in, 2 * C_out * L_out), np.float32)
    A2[: C_in * L_in, : C_out * L_out] = A
    A2[C_in * L_in:, C_out * L_out:] = A
    bias_flat = np.tile(np.repeat(b, L_out), 2)         # (2*C_out*L_out,)
    return A2, bias_flat, L_out


def prepare_operators(params, *, input_size):
    """One-time weight-only preprocessing: folded conv operators, dense weights,
    one packed bias slab, and static layer-width metadata."""
    conv_layers = [(params["in_conv_w"], params["in_conv_b"], 1)]
    conv_layers += [(w, b, 2) for w, b in zip(params["conv_w"], params["conv_b"])]

    ops, biases, widths = [], [], []
    L_cur = input_size
    for w, b, stride in conv_layers:
        A2, bias_flat, L_cur = _fold_conv_operator(w, b, L_cur, stride)
        ops.append(A2)
        biases.append(bias_flat)
        widths.append(A2.shape[1])

    for w, b in zip(params["dense_w"], params["dense_b"]):
        w = np.asarray(w, np.float32)
        ops.append(w)
        biases.append(np.asarray(b, np.float32))
        widths.append(w.shape[1])

    c_in = np.asarray(params["in_conv_w"]).shape[1]
    feat0 = 2 * c_in * input_size
    assert ops[0].shape[0] == feat0

    max_w = max(widths)
    bias_slab = np.zeros((len(biases), max_w), np.float32)
    for l, b in enumerate(biases):
        bias_slab[l, : b.shape[0]] = b

    return dict(
        ops=[jnp.asarray(a) for a in ops],
        bias_slab=jnp.asarray(bias_slab),
        widths=tuple(int(w) for w in widths),
        feat0=int(feat0),
        out_size=int(widths[-1]),
    )


# ---------------------------------------------------------------------------
# Fused Pallas kernel: entire forward for one batch tile (Bt samples).
# ---------------------------------------------------------------------------
def _activation(x, act):
    if act == "lrelu":
        return jnp.where(x > 0, x, 0.01 * x)   # PyTorch LeakyReLU default slope
    return jnp.maximum(x, 0.0)                 # relu (get_act's fallback too)


def _fused_forward_kernel(*refs, n_ops, widths, act):
    xs_ref = refs[0]
    op_refs = refs[1:1 + n_ops]
    bias_ref = refs[1 + n_ops]
    o_ref = refs[2 + n_ops]

    h = xs_ref[0].astype(jnp.float32)          # (Bt, feat0), flattened samples
    for l in range(n_ops):
        z = jnp.dot(h, op_refs[l][...], preferred_element_type=jnp.float32)
        z = z + bias_ref[l:l + 1, :widths[l]]  # packed bias slab, static slice
        # No activation after in_conv (l == 0) or after the final dense layer;
        # dropout is identity (eval semantics).
        if 0 < l < n_ops - 1:
            z = _activation(z, act)
        h = z
    o_ref[0] = h.astype(o_ref.dtype)


# ---------------------------------------------------------------------------
# Wrapper: boundary flatten/concat + batch tiling + pallas_call.
# ---------------------------------------------------------------------------
def latent_discriminator_forward(prep, x, x_context, *, act="relu",
                                 max_batch_tile=128):
    """x, x_context: (B, c_in, L) NCL (PyTorch convention). Returns (B, output_size)."""
    B = x.shape[0]
    feat0 = prep["feat0"]
    out_size = prep["out_size"]
    ops = prep["ops"]
    bias_slab = prep["bias_slab"]
    n_ops = len(ops)

    # Per-sample flat row = [x channel-major | x_context channel-major]; this is
    # exactly the order the folded operators and dense-0 weights expect.
    xs = jnp.concatenate(
        [x.reshape(B, -1), x_context.reshape(B, -1)], axis=1
    ).astype(jnp.float32)                                  # (B, feat0)

    # Batch tiling: amortize per-grid-step overhead over Bt samples, while
    # keeping >= 2 grid steps (so v7x's two TensorCores both get a tile).
    if B >= 2:
        num_steps = max(2, pl.cdiv(B, max_batch_tile))
    else:
        num_steps = 1
    Bt = pl.cdiv(B, num_steps)
    B_pad = num_steps * Bt
    if B_pad != B:
        xs = jnp.pad(xs, ((0, B_pad - B), (0, 0)))
    xs = xs.reshape(num_steps, Bt, feat0)

    # Activations blocked per batch tile; operators / bias slab are full-array
    # blocks with constant index maps -> fetched to VMEM once, resident.
    in_specs = [pl.BlockSpec((1, Bt, feat0), lambda i: (i, 0, 0))]
    in_specs += [pl.BlockSpec(op.shape, lambda i: (0, 0)) for op in ops]
    in_specs += [pl.BlockSpec(bias_slab.shape, lambda i: (0, 0))]

    out = pl.pallas_call(
        functools.partial(_fused_forward_kernel, n_ops=n_ops,
                          widths=prep["widths"], act=act),
        out_shape=jax.ShapeDtypeStruct((num_steps, Bt, out_size), x.dtype),
        grid=(num_steps,),
        in_specs=in_specs,
        out_specs=pl.BlockSpec((1, Bt, out_size), lambda i: (i, 0, 0)),
        compiler_params=pltpu.CompilerParams(dimension_semantics=("parallel",)),
    )(xs, *ops, bias_slab)

    return out.reshape(B_pad, out_size)[:B]


# ---------------------------------------------------------------------------
# Parameter init (deterministic, PyTorch-like uniform(-1/sqrt(fan_in), ...))
# dense weights stored as (d_in, d_out) == torch weight transposed; the first
# dense layer's rows follow the PyTorch NCL flatten order.
# ---------------------------------------------------------------------------
def _uniform(key, shape, fan_in):
    bound = 1.0 / np.sqrt(float(fan_in))
    return jax.random.uniform(key, shape, jnp.float32, -bound, bound)


def init_params(key, *, input_size, output_size, c_in, c_h, kernel_size,
                n_conv_layers, n_dense_layers, d_h):
    params = {}
    keys = jax.random.split(key, 2 + 2 * n_conv_layers + 2 * n_dense_layers)
    ki = iter(range(len(keys)))

    fan = c_in * kernel_size
    params["in_conv_w"] = _uniform(keys[next(ki)], (c_h, c_in, kernel_size), fan)
    params["in_conv_b"] = _uniform(keys[next(ki)], (c_h,), fan)

    params["conv_w"], params["conv_b"] = [], []
    fan = c_h * kernel_size
    for _ in range(n_conv_layers):
        params["conv_w"].append(_uniform(keys[next(ki)], (c_h, c_h, kernel_size), fan))
        params["conv_b"].append(_uniform(keys[next(ki)], (c_h,), fan))

    dense_input_size = input_size
    for _ in range(n_conv_layers):
        dense_input_size = ceil(dense_input_size * 0.5)
    dense_input_size *= c_h

    dense_dims = [dense_input_size * 2, d_h] + [d_h] * (n_dense_layers - 2) + [output_size]
    params["dense_w"], params["dense_b"] = [], []
    for l in range(n_dense_layers):
        din, dout = dense_dims[l], dense_dims[l + 1]
        params["dense_w"].append(_uniform(keys[next(ki)], (din, dout), din))
        params["dense_b"].append(_uniform(keys[next(ki)], (dout,), din))
    return params


# ---------------------------------------------------------------------------
# Pure-JAX reference (mirrors the PyTorch module) for correctness checking.
# ---------------------------------------------------------------------------
def _reference_forward(params, x, x_context, *, act):
    def act_fn(v):
        return jnp.where(v > 0, v, 0.01 * v) if act == "lrelu" else jnp.maximum(v, 0.0)

    def conv1d(h, w, b, stride):
        K = w.shape[2]
        pad = (K // 2, K // 2 - 1) if K % 2 == 0 else (K // 2, K // 2)
        hp = jnp.pad(h, ((0, 0), (0, 0), pad), mode="reflect")
        L_out = (hp.shape[2] - K) // stride + 1
        idx = jnp.arange(L_out)[:, None] * stride + jnp.arange(K)[None, :]
        patches = hp[:, :, idx]                               # (B, C_in, L_out, K)
        return jnp.einsum("bclk,dck->bdl", patches, w) + b[None, :, None]

    def conv_blocks(h):
        out = conv1d(h, params["in_conv_w"], params["in_conv_b"], 1)
        for l in range(len(params["conv_w"])):
            out = act_fn(conv1d(out, params["conv_w"][l], params["conv_b"][l], 2))
        return out.reshape(out.shape[0], -1)

    fused = jnp.concatenate([conv_blocks(x), conv_blocks(x_context)], axis=1)
    out = fused
    n_dense = len(params["dense_w"])
    for l in range(n_dense - 1):
        out = act_fn(out @ params["dense_w"][l] + params["dense_b"][l])
    return out @ params["dense_w"][-1] + params["dense_b"][-1]


# ---------------------------------------------------------------------------
if __name__ == "__main__":
    cfg = dict(
        input_size=16, output_size=2, c_in=4, c_h=8, kernel_size=3,
        n_conv_layers=2, n_dense_layers=3, d_h=32, act="relu",
    )
    B = 4

    key = jax.random.PRNGKey(0)
    kp, kx, kc = jax.random.split(key, 3)
    params = init_params(
        kp,
        input_size=cfg["input_size"], output_size=cfg["output_size"],
        c_in=cfg["c_in"], c_h=cfg["c_h"], kernel_size=cfg["kernel_size"],
        n_conv_layers=cfg["n_conv_layers"], n_dense_layers=cfg["n_dense_layers"],
        d_h=cfg["d_h"],
    )

    x = jax.random.normal(kx, (B, cfg["c_in"], cfg["input_size"]), jnp.float32)
    x_context = jax.random.normal(kc, (B, cfg["c_in"], cfg["input_size"]), jnp.float32)

    # One-time weight-only preprocessing, hoisted out of the forward path.
    prep = prepare_operators(params, input_size=cfg["input_size"])

    fwd = jax.jit(functools.partial(latent_discriminator_forward, prep, act=cfg["act"]))
    out = fwd(x, x_context)
    jax.block_until_ready(out)
    assert out.shape == (B, cfg["output_size"]), out.shape

    ref = _reference_forward(params, x, x_context, act=cfg["act"])
    assert jnp.allclose(out, ref, rtol=1e-3, atol=1e-3), (out, ref)

    print("KERNEL_OK")
</pallas_src>

<mosaic_0001>
module attributes {stable_mosaic.version = 11 : i64} {
  func.func @_fused_forward_kernel(%arg0: i32, %arg1: memref<1x2x128xf32, #tpu.memory_space<vmem>>, %arg2: memref<128x256xf32, #tpu.memory_space<vmem>>, %arg3: memref<256x128xf32, #tpu.memory_space<vmem>>, %arg4: memref<128x64xf32, #tpu.memory_space<vmem>>, %arg5: memref<64x32xf32, #tpu.memory_space<vmem>>, %arg6: memref<32x32xf32, #tpu.memory_space<vmem>>, %arg7: memref<32x2xf32, #tpu.memory_space<vmem>>, %arg8: memref<6x256xf32, #tpu.memory_space<vmem>>, %arg9: memref<1x2x2xf32, #tpu.memory_space<vmem>>) attributes {dimension_semantics = [#tpu.dimension_semantics<parallel>], iteration_bounds = array<i64: 2>, scalar_prefetch = 0 : i64, scratch_operands = 0 : i64, tpu.core_type = #tpu.core_type<tc>, window_params = [{transform_indices = @transform_0, window_bounds = array<i64: 1, 2, 128>}, {pipeline_mode = #tpu.pipeline_mode<synchronous>, transform_indices = @transform_1, window_bounds = array<i64: 128, 256>}, {pipeline_mode = #tpu.pipeline_mode<synchronous>, transform_indices = @transform_2, window_bounds = array<i64: 256, 128>}, {pipeline_mode = #tpu.pipeline_mode<synchronous>, transform_indices = @transform_3, window_bounds = array<i64: 128, 64>}, {pipeline_mode = #tpu.pipeline_mode<synchronous>, transform_indices = @transform_4, window_bounds = array<i64: 64, 32>}, {pipeline_mode = #tpu.pipeline_mode<synchronous>, transform_indices = @transform_5, window_bounds = array<i64: 32, 32>}, {pipeline_mode = #tpu.pipeline_mode<synchronous>, transform_indices = @transform_6, window_bounds = array<i64: 32, 2>}, {pipeline_mode = #tpu.pipeline_mode<synchronous>, transform_indices = @transform_7, window_bounds = array<i64: 6, 256>}, {transform_indices = @transform_8, window_bounds = array<i64: 1, 2, 2>}]} {
    %c0 = arith.constant 0 : index
    %c0_0 = arith.constant 0 : index
    %c0_1 = arith.constant 0 : index
    %0 = vector.load %arg1[%c0, %c0_0, %c0_1] : memref<1x2x128xf32, #tpu.memory_space<vmem>>, vector<1x2x128xf32>
    %1 = vector.shape_cast %0 : vector<1x2x128xf32> to vector<2x128xf32>
    %c0_2 = arith.constant 0 : index
    %c0_3 = arith.constant 0 : index
    %2 = vector.load %arg2[%c0_2, %c0_3] : memref<128x256xf32, #tpu.memory_space<vmem>>, vector<128x256xf32>
    %cst = arith.constant dense<0.000000e+00> : vector<2x256xf32>
    %3 = tpu.matmul %1, %2, %cst {dimension_numbers = #tpu.dot_dimension_numbers<[1], [0], [0], [1], [0, 0, 1, 1], [], []>} : vector<2x128xf32>, vector<128x256xf32>, vector<2x256xf32> -> vector<2x256xf32>
    %c0_4 = arith.constant 0 : index
    %c0_5 = arith.constant 0 : index
    %4 = vector.load %arg8[%c0_4, %c0_5] : memref<6x256xf32, #tpu.memory_space<vmem>>, vector<1x256xf32>
    %5 = vector.broadcast %4 : vector<1x256xf32> to vector<2x256xf32>
    %6 = arith.addf %3, %5 : vector<2x256xf32>
    %c0_6 = arith.constant 0 : index
    %c0_7 = arith.constant 0 : index
    %7 = vector.load %arg3[%c0_6, %c0_7] : memref<256x128xf32, #tpu.memory_space<vmem>>, vector<256x128xf32>
    %cst_8 = arith.constant dense<0.000000e+00> : vector<2x128xf32>
    %8 = tpu.matmul %6, %7, %cst_8 {dimension_numbers = #tpu.dot_dimension_numbers<[1], [0], [0], [1], [0, 0, 1, 1], [], []>} : vector<2x256xf32>, vector<256x128xf32>, vector<2x128xf32> -> vector<2x128xf32>
    %c1 = arith.constant 1 : index
    %c0_9 = arith.constant 0 : index
    %9 = vector.load %arg8[%c1, %c0_9] : memref<6x256xf32, #tpu.memory_space<vmem>>, vector<1x128xf32>
    %10 = vector.broadcast %9 : vector<1x128xf32> to vector<2x128xf32>
    %11 = arith.addf %8, %10 : vector<2x128xf32>
    %cst_10 = arith.constant 0.000000e+00 : f32
    %12 = vector.broadcast %cst_10 : f32 to vector<2x128xf32>
    %13 = arith.maximumf %11, %12 : vector<2x128xf32>
    %c0_11 = arith.constant 0 : index
    %c0_12 = arith.constant 0 : index
    %14 = vector.load %arg4[%c0_11, %c0_12] : memref<128x64xf32, #tpu.memory_space<vmem>>, vector<128x64xf32>
    %cst_13 = arith.constant dense<0.000000e+00> : vector<2x64xf32>
    %15 = tpu.matmul %13, %14, %cst_13 {dimension_numbers = #tpu.dot_dimension_numbers<[1], [0], [0], [1], [0, 0, 1, 1], [], []>} : vector<2x128xf32>, vector<128x64xf32>, vector<2x64xf32> -> vector<2x64xf32>
    %c2 = arith.constant 2 : index
    %c0_14 = arith.constant 0 : index
    %16 = vector.load %arg8[%c2, %c0_14] : memref<6x256xf32, #tpu.memory_space<vmem>>, vector<1x64xf32>
    %17 = vector.broadcast %16 : vector<1x64xf32> to vector<2x64xf32>
    %18 = arith.addf %15, %17 : vector<2x64xf32>
    %cst_15 = arith.constant 0.000000e+00 : f32
    %19 = vector.broadcast %cst_15 : f32 to vector<2x64xf32>
    %20 = arith.maximumf %18, %19 : vector<2x64xf32>
    %c0_16 = arith.constant 0 : index
    %c0_17 = arith.constant 0 : index
    %21 = vector.load %arg5[%c0_16, %c0_17] : memref<64x32xf32, #tpu.memory_space<vmem>>, vector<64x32xf32>
    %cst_18 = arith.constant dense<0.000000e+00> : vector<2x32xf32>
    %22 = tpu.matmul %20, %21, %cst_18 {dimension_numbers = #tpu.dot_dimension_numbers<[1], [0], [0], [1], [0, 0, 1, 1], [], []>} : vector<2x64xf32>, vector<64x32xf32>, vector<2x32xf32> -> vector<2x32xf32>
    %c3 = arith.constant 3 : index
    %c0_19 = arith.constant 0 : index
    %23 = vector.load %arg8[%c3, %c0_19] : memref<6x256xf32, #tpu.memory_space<vmem>>, vector<1x32xf32>
    %24 = vector.broadcast %23 : vector<1x32xf32> to vector<2x32xf32>
    %25 = arith.addf %22, %24 : vector<2x32xf32>
    %cst_20 = arith.constant 0.000000e+00 : f32
    %26 = vector.broadcast %cst_20 : f32 to vector<2x32xf32>
    %27 = arith.maximumf %25, %26 : vector<2x32xf32>
    %c0_21 = arith.constant 0 : index
    %c0_22 = arith.constant 0 : index
    %28 = vector.load %arg6[%c0_21, %c0_22] : memref<32x32xf32, #tpu.memory_space<vmem>>, vector<32x32xf32>
    %cst_23 = arith.constant dense<0.000000e+00> : vector<2x32xf32>
    %29 = tpu.matmul %27, %28, %cst_23 {dimension_numbers = #tpu.dot_dimension_numbers<[1], [0], [0], [1], [0, 0, 1, 1], [], []>} : vector<2x32xf32>, vector<32x32xf32>, vector<2x32xf32> -> vector<2x32xf32>
    %c4 = arith.constant 4 : index
    %c0_24 = arith.constant 0 : index
    %30 = vector.load %arg8[%c4, %c0_24] : memref<6x256xf32, #tpu.memory_space<vmem>>, vector<1x32xf32>
    %31 = vector.broadcast %30 : vector<1x32xf32> to vector<2x32xf32>
    %32 = arith.addf %29, %31 : vector<2x32xf32>
    %cst_25 = arith.constant 0.000000e+00 : f32
    %33 = vector.broadcast %cst_25 : f32 to vector<2x32xf32>
    %34 = arith.maximumf %32, %33 : vector<2x32xf32>
    %c0_26 = arith.constant 0 : index
    %c0_27 = arith.constant 0 : index
    %35 = vector.load %arg7[%c0_26, %c0_27] : memref<32x2xf32, #tpu.memory_space<vmem>>, vector<32x2xf32>
    %cst_28 = arith.constant dense<0.000000e+00> : vector<2x2xf32>
    %36 = tpu.matmul %34, %35, %cst_28 {dimension_numbers = #tpu.dot_dimension_numbers<[1], [0], [0], [1], [0, 0, 1, 1], [], []>} : vector<2x32xf32>, vector<32x2xf32>, vector<2x2xf32> -> vector<2x2xf32>
    %c5 = arith.constant 5 : index
    %c0_29 = arith.constant 0 : index
    %37 = vector.load %arg8[%c5, %c0_29] : memref<6x256xf32, #tpu.memory_space<vmem>>, vector<1x2xf32>
    %38 = vector.broadcast %37 : vector<1x2xf32> to vector<2x2xf32>
    %39 = arith.addf %36, %38 : vector<2x2xf32>
    %c0_30 = arith.constant 0 : index
    %c0_31 = arith.constant 0 : index
    %c0_32 = arith.constant 0 : index
    %40 = vector.load %arg9[%c0_30, %c0_31, %c0_32] : memref<1x2x2xf32, #tpu.memory_space<vmem>>, vector<1x2x2xf32>
    %41 = vector.shape_cast %40 : vector<1x2x2xf32> to vector<2x2xf32>
    %42 = vector.shape_cast %39 : vector<2x2xf32> to vector<1x2x2xf32>
    tpu.vector_store %arg9[%c0_30, %c0_31, %c0_32], %42 {strides = array<i32>} : memref<1x2x2xf32, #tpu.memory_space<vmem>>, vector<1x2x2xf32>,
    return
  }
  func.func @transform_0(%arg0: i32) -> (i32, i32, i32) {
    %c0_i32 = arith.constant 0 : i32
    %c0_i32_0 = arith.constant 0 : i32
    %c0_i32_1 = arith.constant 0 : i32
    return %arg0, %c0_i32, %c0_i32_0 : i32, i32, i32
  }
  func.func @transform_1(%arg0: i32) -> (i32, i32) {
    %c0_i32 = arith.constant 0 : i32
    %c0_i32_0 = arith.constant 0 : i32
    %c0_i32_1 = arith.constant 0 : i32
    return %c0_i32, %c0_i32_0 : i32, i32
  }
  func.func @transform_2(%arg0: i32) -> (i32, i32) {
    %c0_i32 = arith.constant 0 : i32
    %c0_i32_0 = arith.constant 0 : i32
    %c0_i32_1 = arith.constant 0 : i32
    return %c0_i32, %c0_i32_0 : i32, i32
  }
  func.func @transform_3(%arg0: i32) -> (i32, i32) {
    %c0_i32 = arith.constant 0 : i32
    %c0_i32_0 = arith.constant 0 : i32
    %c0_i32_1 = arith.constant 0 : i32
    return %c0_i32, %c0_i32_0 : i32, i32
  }
  func.func @transform_4(%arg0: i32) -> (i32, i32) {
    %c0_i32 = arith.constant 0 : i32
    %c0_i32_0 = arith.constant 0 : i32
    %c0_i32_1 = arith.constant 0 : i32
    return %c0_i32, %c0_i32_0 : i32, i32
  }
  func.func @transform_5(%arg0: i32) -> (i32, i32) {
    %c0_i32 = arith.constant 0 : i32
    %c0_i32_0 = arith.constant 0 : i32
    %c0_i32_1 = arith.constant 0 : i32
    return %c0_i32, %c0_i32_0 : i32, i32
  }
  func.func @transform_6(%arg0: i32) -> (i32, i32) {
    %c0_i32 = arith.constant 0 : i32
    %c0_i32_0 = arith.constant 0 : i32
    %c0_i32_1 = arith.constant 0 : i32
    return %c0_i32, %c0_i32_0 : i32, i32
  }
  func.func @transform_7(%arg0: i32) -> (i32, i32) {
    %c0_i32 = arith.constant 0 : i32
    %c0_i32_0 = arith.constant 0 : i32
    %c0_i32_1 = arith.constant 0 : i32
    return %c0_i32, %c0_i32_0 : i32, i32
  }
  func.func @transform_8(%arg0: i32) -> (i32, i32, i32) {
    %c0_i32 = arith.constant 0 : i32
    %c0_i32_0 = arith.constant 0 : i32
    %c0_i32_1 = arith.constant 0 : i32
    return %arg0, %c0_i32, %c0_i32_0 : i32, i32, i32
  }
}

</mosaic_0001>

<llo_original>
// kernel: latent_discriminator_forward.1
$region0: #{latent_discriminator_forward.1}
  #allocation0 [shape = 'u32[]', space=smem, size = 0x4, offset = 0x4, fixed_abs, tag = 'smem constant byte address 0x4 - core index']
  #allocation1 [shape = 'u32[144,128]{1,0:T(1,128)}', space=vmem, size = 0x12000, scoped, tag = 'internal scratch']
  %s0 = inlined_call_operand.vmem [shape: f32[2,2,128], index: 0, kind: input, shape index: {}]
  %s1 = inlined_call_operand.hbm [shape: f32[128,256], index: 1, kind: input, shape index: {}]
  %s2 = inlined_call_operand.hbm [shape: f32[256,128], index: 2, kind: input, shape index: {}]
  %s3 = inlined_call_operand.hbm [shape: f32[128,64], index: 3, kind: input, shape index: {}]
  %s4 = inlined_call_operand.hbm [shape: f32[64,32], index: 4, kind: input, shape index: {}]
  %s5 = inlined_call_operand.vmem [shape: f32[32,32], index: 5, kind: input, shape index: {}]
  %s6 = inlined_call_operand.vmem [shape: f32[32,2], index: 6, kind: input, shape index: {}]
  %s7 = inlined_call_operand.hbm [shape: f32[6,256], index: 7, kind: input, shape index: {}]
  %s8 = inlined_call_operand.vmem [shape: f32[2,2,2], index: 8, kind: output, shape index: {}]
  %s9 = sld [smem:[#allocation0]]
  $region85: #{latent_discriminator_forward.1} parent=0
    _
  %s11 = ssub.s32 1, %s9
  %s12 = scalar_select 0, %s11, %s9
  $region1: #{latent_discriminator_forward.1} parent=0
    #allocation2 [shape = 'u8[131072]{0}', space=vmem, size = 0x20000, scoped, tag = 'input window, operand 1, single buffered']
    #allocation3 [shape = 's32[2]{0}', space=sflag, size = 0x8, scoped, tag = 'scoped memory for latent_discriminator_forward.1']
    #allocation4 [shape = 'u8[131072]{0}', space=vmem, size = 0x20000, scoped, tag = 'input window, operand 2, single buffered']
    #allocation5 [shape = 's32[1]{0}', space=sflag, size = 0x4, scoped, tag = 'scoped memory for latent_discriminator_forward.1']
    #allocation6 [shape = 'u8[65536]{0}', space=vmem, size = 0x10000, scoped, tag = 'input window, operand 3, single buffered']
    #allocation7 [shape = 'u8[32768]{0}', space=vmem, size = 0x8000, scoped, tag = 'input window, operand 4, single buffered']
    #allocation8 [shape = 's32[1]{0}', space=sflag, size = 0x4, scoped, tag = 'scoped memory for latent_discriminator_forward.1']
    #allocation9 [shape = 'u8[8192]{0}', space=vmem, size = 0x2000, scoped, tag = 'input window, operand 7, single buffered']
    %13 = vsyncpa [#allocation3], 0
    %14 = vsyncpa [#allocation5], 0
    %15 = vsyncpa [#allocation8], 0
    loop: start=0, step=1, limit=4
    $region2: #{latent_discriminator_forward.1} parent=1 // loop_pre_header
      _
    $region3: #{latent_discriminator_forward.1} parent=1 // loop_header
      %s17 = sphi 0, %s21
      %p18 = scmp.ge.s32.totalorder %s17, 4
      %s27 = sphi 0, %s29
      %s30 = sphi 0, %s27
      %s31 = sphi 0, %s30
      %s47 = sphi 0, %s31
      %s51 = sphi 0, %s51
      %s53 = sphi 0, %s51
      %s54 = sphi 0, %s53
      %s68 = sphi 0, %s54
      %s72 = sphi 0, %s72
      %s74 = sphi 0, %s72
      %s75 = sphi 0, %s74
      %s89 = sphi 0, %s75
      %s93 = sphi 0, %s93
      %s95 = sphi 0, %s93
      %s96 = sphi 0, %s95
      %s110 = sphi 0, %s96
      %s114 = sphi 0, %s114
      %s116 = sphi 0, %s114
      %s117 = sphi 0, %s116
      %s131 = sphi 0, %s117
      %s135 = sphi 0, %s135
      %s137 = sphi 0, %s135
      %s138 = sphi 0, %s137
      %s152 = sphi 0, %s138
      %s156 = sphi 0, %s156
      %s158 = sphi 0, %s156
      %s159 = sphi 0, %s158
      %s173 = sphi 0, %s159
      %s177 = sphi 0, %s177
      %s179 = sphi 0, %s177
      %s180 = sphi 0, %s179
      %s194 = sphi 0, %s180
      %s200 = sphi 0, %s202
      %s203 = sphi 0, %s200
      %s204 = sphi 0, %s203
      %s220 = sphi 0, %s204
    $region4: #{latent_discriminator_forward.1} parent=1 // loop_header_branch
      %20 = sbr.rel (%p18) target = $region8
    $region5: #{latent_discriminator_forward.1} parent=1 // loop_body
      %s22 = ssub.s32 %s17, 1
      %s23 = ssub.s32 %s17, 2
      %s24 = sadd.s32 %s17, 1
      %s25 = ssub.s32 %s17, %s24
      %p26 = scmp.eq.s32.totalorder %s25, 0
      %s28 = sadd.s32 %s27, 1
      %s29 = scalar_select %p26, %s27, %s28
      %p32 = pneg %p26
      %p33 = scmp.eq.s32.totalorder %s17, 1
      %p34 = por %p32, %p33
      %p35 = scmp.ne.s32.totalorder %s27, %s30
      %p36 = scmp.eq.s32.totalorder %s17, 0
      %p37 = por %p35, %p36
      %p38 = scmp.ne.s32.totalorder %s27, %s30
      %p39 = scmp.eq.s32.totalorder %s22, 1
      %p40 = por %p38, %p39
      %p41 = scmp.ne.s32.totalorder %s30, %s31
      %p42 = scmp.eq.s32.totalorder %s22, 0
      %p43 = por %p41, %p42
      %p44 = scmp.ne.s32.totalorder %s30, %s31
      %p45 = scmp.eq.s32.totalorder %s23, 1
      %p46 = por %p44, %p45
      %p48 = scmp.ne.s32.totalorder %s31, %s47
      %p49 = scmp.eq.s32.totalorder %s23, 0
      %p50 = por %p48, %p49
      %s52 = sadd.s32 %s51, 1
      %p55 = scmp.eq.s32.totalorder %s17, 1
      %p56 = scmp.ne.s32.totalorder %s51, %s53
      %p57 = scmp.eq.s32.totalorder %s17, 0
      %p58 = por %p56, %p57
      %p59 = scmp.ne.s32.totalorder %s51, %s53
      %p60 = scmp.eq.s32.totalorder %s22, 1
      %p61 = por %p59, %p60
      %p62 = scmp.ne.s32.totalorder %s53, %s54
      %p63 = scmp.eq.s32.totalorder %s22, 0
      %p64 = por %p62, %p63
      %p65 = scmp.ne.s32.totalorder %s53, %s54
      %p66 = scmp.eq.s32.totalorder %s23, 1
      %p67 = por %p65, %p66
      %p69 = scmp.ne.s32.totalorder %s54, %s68
      %p70 = scmp.eq.s32.totalorder %s23, 0
      %p71 = por %p69, %p70
      %s73 = sadd.s32 %s72, 1
      %p76 = scmp.eq.s32.totalorder %s17, 1
      %p77 = scmp.ne.s32.totalorder %s72, %s74
      %p78 = scmp.eq.s32.totalorder %s17, 0
      %p79 = por %p77, %p78
      %p80 = scmp.ne.s32.totalorder %s72, %s74
      %p81 = scmp.eq.s32.totalorder %s22, 1
      %p82 = por %p80, %p81
      %p83 = scmp.ne.s32.totalorder %s74, %s75
      %p84 = scmp.eq.s32.totalorder %s22, 0
      %p85 = por %p83, %p84
      %p86 = scmp.ne.s32.totalorder %s74, %s75
      %p87 = scmp.eq.s32.totalorder %s23, 1
      %p88 = por %p86, %p87
      %p90 = scmp.ne.s32.totalorder %s75, %s89
      %p91 = scmp.eq.s32.totalorder %s23, 0
      %p92 = por %p90, %p91
      %s94 = sadd.s32 %s93, 1
      %p97 = scmp.eq.s32.totalorder %s17, 1
      %p98 = scmp.ne.s32.totalorder %s93, %s95
      %p99 = scmp.eq.s32.totalorder %s17, 0
      %p100 = por %p98, %p99
      %p101 = scmp.ne.s32.totalorder %s93, %s95
      %p102 = scmp.eq.s32.totalorder %s22, 1
      %p103 = por %p101, %p102
      %p104 = scmp.ne.s32.totalorder %s95, %s96
      %p105 = scmp.eq.s32.totalorder %s22, 0
      %p106 = por %p104, %p105
      %p107 = scmp.ne.s32.totalorder %s95, %s96
      %p108 = scmp.eq.s32.totalorder %s23, 1
      %p109 = por %p107, %p108
      %p111 = scmp.ne.s32.totalorder %s96, %s110
      %p112 = scmp.eq.s32.totalorder %s23, 0
      %p113 = por %p111, %p112
      %s115 = sadd.s32 %s114, 1
      %p118 = scmp.eq.s32.totalorder %s17, 1
      %p119 = scmp.ne.s32.totalorder %s114, %s116
      %p120 = scmp.eq.s32.totalorder %s17, 0
      %p121 = por %p119, %p120
      %p122 = scmp.ne.s32.totalorder %s114, %s116
      %p123 = scmp.eq.s32.totalorder %s22, 1
      %p124 = por %p122, %p123
      %p125 = scmp.ne.s32.totalorder %s116, %s117
      %p126 = scmp.eq.s32.totalorder %s22, 0
      %p127 = por %p125, %p126
      %p128 = scmp.ne.s32.totalorder %s116, %s117
      %p129 = scmp.eq.s32.totalorder %s23, 1
      %p130 = por %p128, %p129
      %p132 = scmp.ne.s32.totalorder %s117, %s131
      %p133 = scmp.eq.s32.totalorder %s23, 0
      %p134 = por %p132, %p133
      %s136 = sadd.s32 %s135, 1
      %p139 = scmp.eq.s32.totalorder %s17, 1
      %p140 = scmp.ne.s32.totalorder %s135, %s137
      %p141 = scmp.eq.s32.totalorder %s17, 0
      %p142 = por %p140, %p141
      %p143 = scmp.ne.s32.totalorder %s135, %s137
      %p144 = scmp.eq.s32.totalorder %s22, 1
      %p145 = por %p143, %p144
      %p146 = scmp.ne.s32.totalorder %s137, %s138
      %p147 = scmp.eq.s32.totalorder %s22, 0
      %p148 = por %p146, %p147
      %p149 = scmp.ne.s32.totalorder %s137, %s138
      %p150 = scmp.eq.s32.totalorder %s23, 1
      %p151 = por %p149, %p150
      %p153 = scmp.ne.s32.totalorder %s138, %s152
      %p154 = scmp.eq.s32.totalorder %s23, 0
      %p155 = por %p153, %p154
      %s157 = sadd.s32 %s156, 1
      %p160 = scmp.eq.s32.totalorder %s17, 1
      %p161 = scmp.ne.s32.totalorder %s156, %s158
      %p162 = scmp.eq.s32.totalorder %s17, 0
      %p163 = por %p161, %p162
      %p164 = scmp.ne.s32.totalorder %s156, %s158
      %p165 = scmp.eq.s32.totalorder %s22, 1
      %p166 = por %p164, %p165
      %p167 = scmp.ne.s32.totalorder %s158, %s159
      %p168 = scmp.eq.s32.totalorder %s22, 0
      %p169 = por %p167, %p168
      %p170 = scmp.ne.s32.totalorder %s158, %s159
      %p171 = scmp.eq.s32.totalorder %s23, 1
      %p172 = por %p170, %p171
      %p174 = scmp.ne.s32.totalorder %s159, %s173
      %p175 = scmp.eq.s32.totalorder %s23, 0
      %p176 = por %p174, %p175
      %s178 = sadd.s32 %s177, 1
      %p181 = scmp.eq.s32.totalorder %s17, 1
      %p182 = scmp.ne.s32.totalorder %s177, %s179
      %p183 = scmp.eq.s32.totalorder %s17, 0
      %p184 = por %p182, %p183
      %p185 = scmp.ne.s32.totalorder %s177, %s179
      %p186 = scmp.eq.s32.totalorder %s22, 1
      %p187 = por %p185, %p186
      %p188 = scmp.ne.s32.totalorder %s179, %s180
      %p189 = scmp.eq.s32.totalorder %s22, 0
      %p190 = por %p188, %p189
      %p191 = scmp.ne.s32.totalorder %s179, %s180
      %p192 = scmp.eq.s32.totalorder %s23, 1
      %p193 = por %p191, %p192
      %p195 = scmp.ne.s32.totalorder %s180, %s194
      %p196 = scmp.eq.s32.totalorder %s23, 0
      %p197 = por %p195, %p196
      %s198 = ssub.s32 %s17, %s24
      %p199 = scmp.eq.s32.totalorder %s198, 0
      %s201 = sadd.s32 %s200, 1
      %s202 = scalar_select %p199, %s200, %s201
      %p205 = pneg %p199
      %p206 = scmp.eq.s32.totalorder %s17, 1
      %p207 = por %p205, %p206
      %p208 = scmp.ne.s32.totalorder %s200, %s203
      %p209 = scmp.eq.s32.totalorder %s17, 0
      %p210 = por %p208, %p209
      %p211 = scmp.ne.s32.totalorder %s200, %s203
      %p212 = scmp.eq.s32.totalorder %s22, 1
      %p213 = por %p211, %p212
      %p214 = scmp.ne.s32.totalorder %s203, %s204
      %p215 = scmp.eq.s32.totalorder %s22, 0
      %p216 = por %p214, %p215
      %p217 = scmp.ne.s32.totalorder %s203, %s204
      %p218 = scmp.eq.s32.totalorder %s23, 1
      %p219 = por %p217, %p218
      %p221 = scmp.ne.s32.totalorder %s204, %s220
      %p222 = scmp.eq.s32.totalorder %s23, 0
      %p223 = por %p221, %p222
      %p224 = scmp.le.s32.totalorder 1, %s17
      %p225 = scmp.lt.s32.totalorder %s17, 3
      %p226 = pnand %p224, %p225
      %p227 = pneg %p226
      // Predicated region
      $region9: #{latent_discriminator_forward.1} parent=5 // pred_check
        _
      $region10: #{latent_discriminator_forward.1} parent=5 // pred_check_branch
        %229 = sbr.rel (%p226) target = $region12
      $region11: #{latent_discriminator_forward.1} parent=5 // pred_region
        %s230 = ssub.s32 %s17, 1
        // Predicated region
        $region13: #{latent_discriminator_forward.1} parent=11 // pred_check
          %p231 = pneg %p64
        $region14: #{latent_discriminator_forward.1} parent=11 // pred_check_branch
          %233 = sbr.rel (%p231) target = $region16
        $region15: #{latent_discriminator_forward.1} parent=11 // pred_region
          %s235 = ssub.s32 4096, 4096
          %236 = vsyncadd [#allocation3], %s235
          %s237 = sshll.u32 [#allocation2], 4
          %s238 = int_to_ptr.vmem [resolvable:$true] %s237
          %243 = dma.hbm_to_vmem [thread:$0]  %s1, 4096, %s238, [#allocation3], 256, 256, 16
        $region16: #{latent_discriminator_forward.1} parent=11 // pred_fallthru
          _
        // Predicated region
        $region17: #{latent_discriminator_forward.1} parent=11 // pred_check
          %p244 = pneg %p85
        $region18: #{latent_discriminator_forward.1} parent=11 // pred_check_branch
          %246 = sbr.rel (%p244) target = $region20
        $region19: #{latent_discriminator_forward.1} parent=11 // pred_region
          %s248 = ssub.s32 4096, 4096
          %249 = vsyncadd [#allocation5], %s248
          %s250 = sshll.u32 [#allocation4], 4
          %s251 = int_to_ptr.vmem [resolvable:$true] %s250
          %256 = dma.hbm_to_vmem [thread:$0]  %s2, 4096, %s251, [#allocation5], 128, 128, 8
        $region20: #{latent_discriminator_forward.1} parent=11 // pred_fallthru
          _
        // Predicated region
        $region21: #{latent_discriminator_forward.1} parent=11 // pred_check
          %p257 = pneg %p106
        $region22: #{latent_discriminator_forward.1} parent=11 // pred_check_branch
          %259 = sbr.rel (%p257) target = $region24
        $region23: #{latent_discriminator_forward.1} parent=11 // pred_region
          %s261 = ssub.s32 2048, 2048
          %262 = vsyncadd [#allocation5], %s261
          %s263 = sshll.u32 [#allocation6], 4
          %s264 = int_to_ptr.vmem [resolvable:$true] %s263
          %269 = dma.hbm_to_vmem [thread:$0]  %s3, 2048, %s264, [#allocation5], 128, 128, 8
        $region24: #{latent_discriminator_forward.1} parent=11 // pred_fallthru
          _
        // Predicated region
        $region25: #{latent_discriminator_forward.1} parent=11 // pred_check
          %p270 = pneg %p127
        $region26: #{latent_discriminator_forward.1} parent=11 // pred_check_branch
          %272 = sbr.rel (%p270) target = $region28
        $region27: #{latent_discriminator_forward.1} parent=11 // pred_region
          %s274 = ssub.s32 1024, 1024
          %275 = vsyncadd [#allocation8], %s274
          %s276 = sshll.u32 [#allocation7], 4
          %s277 = int_to_ptr.vmem [resolvable:$true] %s276
          %282 = dma.hbm_to_vmem [thread:$0]  %s4, 1024, %s277, [#allocation8], 128, 128, 8
        $region28: #{latent_discriminator_forward.1} parent=11 // pred_fallthru
          _
        // Predicated region
        $region29: #{latent_discriminator_forward.1} parent=11 // pred_check
          %p283 = pneg %p148
        $region30: #{latent_discriminator_forward.1} parent=11 // pred_check_branch
          %285 = sbr.rel (%p283) target = $region32
        $region31: #{latent_discriminator_forward.1} parent=11 // pred_region
          _
        $region32: #{latent_discriminator_forward.1} parent=11 // pred_fallthru
          _
        // Predicated region
        $region33: #{latent_discriminator_forward.1} parent=11 // pred_check
          %p286 = pneg %p169
        $region34: #{latent_discriminator_forward.1} parent=11 // pred_check_branch
          %288 = sbr.rel (%p286) target = $region36
        $region35: #{latent_discriminator_forward.1} parent=11 // pred_region
          _
        $region36: #{latent_discriminator_forward.1} parent=11 // pred_fallthru
          _
        // Predicated region
        $region37: #{latent_discriminator_forward.1} parent=11 // pred_check
          %p289 = pneg %p190
        $region38: #{latent_discriminator_forward.1} parent=11 // pred_check_branch
          %291 = sbr.rel (%p289) target = $region40
        $region39: #{latent_discriminator_forward.1} parent=11 // pred_region
          %s293 = ssub.s32 256, 256
          %294 = vsyncadd [#allocation8], %s293
          %s296 = sshll.u32 [#allocation9], 4
          %s297 = int_to_ptr.vmem [resolvable:$true] %s296
          %299 = dma.hbm_to_vmem [thread:$0]  %s7, 256, %s297, [#allocation8]
        $region40: #{latent_discriminator_forward.1} parent=11 // pred_fallthru
          _
      $region12: #{latent_discriminator_forward.1} parent=5 // pred_fallthru
        _
      %p300 = scmp.lt.s32.totalorder %s17, 2
      // Predicated region
      $region41: #{latent_discriminator_forward.1} parent=5 // pred_check
        %p301 = pneg %p300
      $region42: #{latent_discriminator_forward.1} parent=5 // pred_check_branch
        %303 = sbr.rel (%p301) target = $region44
      $region43: #{latent_discriminator_forward.1} parent=5 // pred_region
        // Predicated region
        $region45: #{latent_discriminator_forward.1} parent=43 // pred_check
          %p304 = pneg %p37
        $region46: #{latent_discriminator_forward.1} parent=43 // pred_check_branch
          %306 = sbr.rel (%p304) target = $region48
        $region47: #{latent_discriminator_forward.1} parent=43 // pred_region
          %p307 = scmp.lt.s32.totalorder %s17, 1
          %s308 = scalar_select %p307, %s17, 1
          %s309 = smul.addr %s308, 2
          %s310 = scalar_lea.vmem %s0, %s309
        $region48: #{latent_discriminator_forward.1} parent=43 // pred_fallthru
          _
      $region44: #{latent_discriminator_forward.1} parent=5 // pred_fallthru
        _
      %p311 = scmp.le.s32.totalorder 1, %s17
      %p312 = scmp.lt.s32.totalorder %s17, 3
      %p313 = pnand %p311, %p312
      %p314 = pneg %p313
      // Predicated region
      $region49: #{latent_discriminator_forward.1} parent=5 // pred_check
        _
      $region50: #{latent_discriminator_forward.1} parent=5 // pred_check_branch
        %316 = sbr.rel (%p313) target = $region52
      $region51: #{latent_discriminator_forward.1} parent=5 // pred_region
        %s317 = ssub.s32 %s17, 1
        // Predicated region
        $region53: #{latent_discriminator_forward.1} parent=51 // pred_check
          %p318 = pneg %p64
        $region54: #{latent_discriminator_forward.1} parent=51 // pred_check_branch
          %320 = sbr.rel (%p318) target = $region56
        $region55: #{latent_discriminator_forward.1} parent=51 // pred_region
          %321 = dma.done [#allocation3], 4096
        $region56: #{latent_discriminator_forward.1} parent=51 // pred_fallthru
          _
        // Predicated region
        $region57: #{latent_discriminator_forward.1} parent=51 // pred_check
          %p322 = pneg %p85
        $region58: #{latent_discriminator_forward.1} parent=51 // pred_check_branch
          %324 = sbr.rel (%p322) target = $region60
        $region59: #{latent_discriminator_forward.1} parent=51 // pred_region
          %325 = dma.done [#allocation5], 4096
        $region60: #{latent_discriminator_forward.1} parent=51 // pred_fallthru
          _
        // Predicated region
        $region61: #{latent_discriminator_forward.1} parent=51 // pred_check
          %p326 = pneg %p106
        $region62: #{latent_discriminator_forward.1} parent=51 // pred_check_branch
          %328 = sbr.rel (%p326) target = $region64
        $region63: #{latent_discriminator_forward.1} parent=51 // pred_region
          %329 = dma.done [#allocation5], 2048
        $region64: #{latent_discriminator_forward.1} parent=51 // pred_fallthru
          _
        // Predicated region
        $region65: #{latent_discriminator_forward.1} parent=51 // pred_check
          %p330 = pneg %p127
        $region66: #{latent_discriminator_forward.1} parent=51 // pred_check_branch
          %332 = sbr.rel (%p330) target = $region68
        $region67: #{latent_discriminator_forward.1} parent=51 // pred_region
          %333 = dma.done [#allocation8], 1024
        $region68: #{latent_discriminator_forward.1} parent=51 // pred_fallthru
          _
        // Predicated region
        $region69: #{latent_discriminator_forward.1} parent=51 // pred_check
          %p334 = pneg %p190
        $region70: #{latent_discriminator_forward.1} parent=51 // pred_check_branch
          %336 = sbr.rel (%p334) target = $region72
        $region71: #{latent_discriminator_forward.1} parent=51 // pred_region
          %337 = dma.done [#allocation8], 256
        $region72: #{latent_discriminator_forward.1} parent=51 // pred_fallthru
          _
        %p338 = scmp.lt.s32.totalorder %s22, 1
        %s339 = scalar_select %p338, %s22, 1
        %s340 = smul.addr %s339, 2
        %s341 = scalar_lea.vmem %s0, %s340
        %p342 = pneg %p43
        %p343 = pneg %p40
        %p344 = pneg %p64
        %p345 = pneg %p61
        %p346 = pneg %p85
        %p347 = pneg %p82
        %p348 = pneg %p106
        %p349 = pneg %p103
        %p350 = pneg %p127
        %p351 = pneg %p124
        %p352 = pneg %p148
        %p353 = pneg %p145
        %p354 = pneg %p169
        %p355 = pneg %p166
        %p356 = pneg %p190
        %p357 = pneg %p187
        %p358 = pneg %p216
        %p359 = pneg %p213
        %p360 = scmp.lt.s32.totalorder %s22, 1
        %s361 = scalar_select %p360, %s22, 1
        %s362 = smul.addr %s361, 2
        %s363 = scalar_lea.vmem %s8, %s362
        %p364 = scmp.lt.s32.totalorder %s22, 1
        %s365 = scalar_select %p364, %s22, 1
        %s366 = smul.addr %s365, 2
        %s367 = scalar_lea.vmem %s0, %s366
        %p368 = scmp.lt.s32.totalorder %s22, 1
        %s369 = scalar_select %p368, %s22, 1
        %s370 = smul.addr %s369, 2
        %s371 = scalar_lea.vmem %s8, %s370
        %v372 = vld [vmem:[%s367] sm:$0x3]
        %v373 = vld [vmem:[#allocation2] sm:$0xff]
        %v374 = vld [vmem:[#allocation2 + $0x8] sm:$0xff]
        %v375 = vld [vmem:[#allocation2 + $0x10] sm:$0xff]
        %v376 = vld [vmem:[#allocation2 + $0x18] sm:$0xff]
        %v377 = vld [vmem:[#allocation2 + $0x20] sm:$0xff]
        %v378 = vld [vmem:[#allocation2 + $0x28] sm:$0xff]
        %v379 = vld [vmem:[#allocation2 + $0x30] sm:$0xff]
        %v380 = vld [vmem:[#allocation2 + $0x38] sm:$0xff]
        %v381 = vld [vmem:[#allocation2 + $0x40] sm:$0xff]
        %v382 = vld [vmem:[#allocation2 + $0x48] sm:$0xff]
        %v383 = vld [vmem:[#allocation2 + $0x50] sm:$0xff]
        %v384 = vld [vmem:[#allocation2 + $0x58] sm:$0xff]
        %v385 = vld [vmem:[#allocation2 + $0x60] sm:$0xff]
        %v386 = vld [vmem:[#allocation2 + $0x68] sm:$0xff]
        %v387 = vld [vmem:[#allocation2 + $0x70] sm:$0xff]
        %v388 = vld [vmem:[#allocation2 + $0x78] sm:$0xff]
        %v389 = vld [vmem:[#allocation2 + $0x80] sm:$0xff]
        %v390 = vld [vmem:[#allocation2 + $0x88] sm:$0xff]
        %v391 = vld [vmem:[#allocation2 + $0x90] sm:$0xff]
        %v392 = vld [vmem:[#allocation2 + $0x98] sm:$0xff]
        %v393 = vld [vmem:[#allocation2 + $0xa0] sm:$0xff]
        %v394 = vld [vmem:[#allocation2 + $0xa8] sm:$0xff]
        %v395 = vld [vmem:[#allocation2 + $0xb0] sm:$0xff]
        %v396 = vld [vmem:[#allocation2 + $0xb8] sm:$0xff]
        %v397 = vld [vmem:[#allocation2 + $0xc0] sm:$0xff]
        %v398 = vld [vmem:[#allocation2 + $0xc8] sm:$0xff]
        %v399 = vld [vmem:[#allocation2 + $0xd0] sm:$0xff]
        %v400 = vld [vmem:[#allocation2 + $0xd8] sm:$0xff]
        %v401 = vld [vmem:[#allocation2 + $0xe0] sm:$0xff]
        %v402 = vld [vmem:[#allocation2 + $0xe8] sm:$0xff]
        %v403 = vld [vmem:[#allocation2 + $0xf0] sm:$0xff]
        %v404 = vld [vmem:[#allocation2 + $0xf8] sm:$0xff]
        %v405 = vld [vmem:[#allocation9] ss:$8 sm:$0x3]
        %v407 = vlaneseq
        %v408 = vshrl.u32 %v407, 7
        %v409 = vsub.s32 0, %v408
        %v410 = vrot.slane %v405, %v409
        %v411 = vlaneseq
        %v412 = vshrl.u32 %v411, 7
        %v413 = vsub.s32 1, %v412
        %v414 = vrot.slane %v405, %v413
        %417 = vmatprep.subr.mxu0 %v404
        %418 = vmatpush1.msra.mxu0 %v403
        %419 = vmatprep.subr.mxu0 %v402
        %420 = vmatpush1.msra.mxu0 %v401
        %421 = vmatprep.subr.mxu0 %v400
        %422 = vmatpush1.msra.mxu0 %v399
        %423 = vmatprep.subr.mxu0 %v398
        %424 = vmatpush1.msra.mxu0 %v397
        %425 = vmatprep.subr.mxu0 %v396
        %426 = vmatpush1.msra.mxu0 %v395
        %427 = vmatprep.subr.mxu0 %v394
        %428 = vmatpush1.msra.mxu0 %v393
        %429 = vmatprep.subr.mxu0 %v392
        %430 = vmatpush1.msra.mxu0 %v391
        %431 = vmatprep.subr.mxu0 %v390
        %432 = vmatpush1.msra.mxu0 %v389
        %433 = vmatprep.subr.mxu0 %v388
        %434 = vmatpush1.msra.mxu0 %v387
        %435 = vmatprep.subr.mxu0 %v386
        %436 = vmatpush1.msra.mxu0 %v385
        %437 = vmatprep.subr.mxu0 %v384
        %438 = vmatpush1.msra.mxu0 %v383
        %439 = vmatprep.subr.mxu0 %v382
        %440 = vmatpush1.msra.mxu0 %v381
        %441 = vmatprep.subr.mxu0 %v380
        %442 = vmatpush1.msra.mxu0 %v379
        %443 = vmatprep.subr.mxu0 %v378
        %444 = vmatpush1.msra.mxu0 %v377
        %445 = vmatprep.subr.mxu0 %v376
        %446 = vmatpush1.msra.mxu0 %v375
        %447 = vmatprep.subr.mxu0 %v374
        %448 = vmatpush1.msra.mxu0 %v373
        %449 = vmatprep.subr.mxu0 0.0
        %450 = vmatpush2.msra.mxu0 0.0
        %451 = vmatprep.subr.mxu0 0.0
        %452 = vmatpush2.msra.mxu0 0.0
        %453 = vmatprep.subr.mxu0 0.0
        %454 = vmatpush2.msra.mxu0 0.0
        %455 = vmatprep.subr.mxu0 0.0
        %456 = vmatpush2.msra.mxu0 0.0
        %457 = vmatprep.subr.mxu0 0.0
        %458 = vmatpush2.msra.mxu0 0.0
        %459 = vmatprep.subr.mxu0 0.0
        %460 = vmatpush2.msra.mxu0 0.0
        %461 = vmatprep.subr.mxu0 0.0
        %462 = vmatpush2.msra.mxu0 0.0
        %463 = vmatprep.subr.mxu0 0.0
        %464 = vmatpush2.msra.mxu0 0.0
        %465 = vmatprep.subr.mxu0 0.0
        %466 = vmatpush2.msra.mxu0 0.0
        %467 = vmatprep.subr.mxu0 0.0
        %468 = vmatpush2.msra.mxu0 0.0
        %469 = vmatprep.subr.mxu0 0.0
        %470 = vmatpush2.msra.mxu0 0.0
        %471 = vmatprep.subr.mxu0 0.0
        %472 = vmatpush2.msra.mxu0 0.0
        %473 = vmatprep.subr.mxu0 0.0
        %474 = vmatpush2.msra.mxu0 0.0
        %475 = vmatprep.subr.mxu0 0.0
        %476 = vmatpush2.msra.mxu0 0.0
        %477 = vmatprep.subr.mxu0 0.0
        %478 = vmatpush2.msra.mxu0 0.0
        %479 = vmatprep.subr.mxu0 0.0
        %480 = vmatpush2.msra.mxu0 0.0
        %481 = vmatprep.mubr.f32.mxu0 0.0
        %482 = vmatmul.mubr.f32.gmra.mxu0 %v372
        %v483 = vpop.f32.mrf.mxu0
        %v484 = vadd.f32 %v410, %v483
        %v485 = vpop.f32.mrf.mxu0
        %v486 = vadd.f32 %v414, %v485
        %487 = vdwg.mxu0
        %v488 = vld [vmem:[#allocation4] sm:$0xff]
        %v489 = vld [vmem:[#allocation4 + $0x8] sm:$0xff]
        %v490 = vld [vmem:[#allocation4 + $0x10] sm:$0xff]
        %v491 = vld [vmem:[#allocation4 + $0x18] sm:$0xff]
        %v492 = vld [vmem:[#allocation4 + $0x20] sm:$0xff]
        %v493 = vld [vmem:[#allocation4 + $0x28] sm:$0xff]
        %v494 = vld [vmem:[#allocation4 + $0x30] sm:$0xff]
        %v495 = vld [vmem:[#allocation4 + $0x38] sm:$0xff]
        %v496 = vld [vmem:[#allocation4 + $0x40] sm:$0xff]
        %v497 = vld [vmem:[#allocation4 + $0x48] sm:$0xff]
        %v498 = vld [vmem:[#allocation4 + $0x50] sm:$0xff]
        %v499 = vld [vmem:[#allocation4 + $0x58] sm:$0xff]
        %v500 = vld [vmem:[#allocation4 + $0x60] sm:$0xff]
        %v501 = vld [vmem:[#allocation4 + $0x68] sm:$0xff]
        %v502 = vld [vmem:[#allocation4 + $0x70] sm:$0xff]
        %v503 = vld [vmem:[#allocation4 + $0x78] sm:$0xff]
        %v504 = vld [vmem:[#allocation4 + $0x80] sm:$0xff]
        %v505 = vld [vmem:[#allocation4 + $0x88] sm:$0xff]
        %v506 = vld [vmem:[#allocation4 + $0x90] sm:$0xff]
        %v507 = vld [vmem:[#allocation4 + $0x98] sm:$0xff]
        %v508 = vld [vmem:[#allocation4 + $0xa0] sm:$0xff]
        %v509 = vld [vmem:[#allocation4 + $0xa8] sm:$0xff]
        %v510 = vld [vmem:[#allocation4 + $0xb0] sm:$0xff]
        %v511 = vld [vmem:[#allocation4 + $0xb8] sm:$0xff]
        %v512 = vld [vmem:[#allocation4 + $0xc0] sm:$0xff]
        %v513 = vld [vmem:[#allocation4 + $0xc8] sm:$0xff]
        %v514 = vld [vmem:[#allocation4 + $0xd0] sm:$0xff]
        %v515 = vld [vmem:[#allocation4 + $0xd8] sm:$0xff]
        %v516 = vld [vmem:[#allocation4 + $0xe0] sm:$0xff]
        %v517 = vld [vmem:[#allocation4 + $0xe8] sm:$0xff]
        %v518 = vld [vmem:[#allocation4 + $0xf0] sm:$0xff]
        %v519 = vld [vmem:[#allocation4 + $0xf8] sm:$0xff]
        %v520 = vld [vmem:[#allocation9 + $0x1] ss:$0 sm:$0xff]
        %521 = vmatprep.subr.mxu0 0.0
        %522 = vmatpush1.msra.mxu0 %v503
        %523 = vmatprep.subr.mxu0 0.0
        %524 = vmatpush1.msra.mxu0 %v502
        %525 = vmatprep.subr.mxu0 0.0
        %526 = vmatpush1.msra.mxu0 %v501
        %527 = vmatprep.subr.mxu0 0.0
        %528 = vmatpush1.msra.mxu0 %v500
        %529 = vmatprep.subr.mxu0 0.0
        %530 = vmatpush1.msra.mxu0 %v499
        %531 = vmatprep.subr.mxu0 0.0
        %532 = vmatpush1.msra.mxu0 %v498
        %533 = vmatprep.subr.mxu0 0.0
        %534 = vmatpush1.msra.mxu0 %v497
        %535 = vmatprep.subr.mxu0 0.0
        %536 = vmatpush1.msra.mxu0 %v496
        %537 = vmatprep.subr.mxu0 0.0
        %538 = vmatpush1.msra.mxu0 %v495
        %539 = vmatprep.subr.mxu0 0.0
        %540 = vmatpush1.msra.mxu0 %v494
        %541 = vmatprep.subr.mxu0 0.0
        %542 = vmatpush1.msra.mxu0 %v493
        %543 = vmatprep.subr.mxu0 0.0
        %544 = vmatpush1.msra.mxu0 %v492
        %545 = vmatprep.subr.mxu0 0.0
        %546 = vmatpush1.msra.mxu0 %v491
        %547 = vmatprep.subr.mxu0 0.0
        %548 = vmatpush1.msra.mxu0 %v490
        %549 = vmatprep.subr.mxu0 0.0
        %550 = vmatpush1.msra.mxu0 %v489
        %551 = vmatprep.subr.mxu0 0.0
        %552 = vmatpush1.msra.mxu0 %v488
        %553 = vmatprep.subr.mxu0 0.0
        %554 = vmatpush2.msra.mxu0 %v519
        %555 = vmatprep.subr.mxu0 0.0
        %556 = vmatpush2.msra.mxu0 %v518
        %557 = vmatprep.subr.mxu0 0.0
        %558 = vmatpush2.msra.mxu0 %v517
        %559 = vmatprep.subr.mxu0 0.0
        %560 = vmatpush2.msra.mxu0 %v516
        %561 = vmatprep.subr.mxu0 0.0
        %562 = vmatpush2.msra.mxu0 %v515
        %563 = vmatprep.subr.mxu0 0.0
        %564 = vmatpush2.msra.mxu0 %v514
        %565 = vmatprep.subr.mxu0 0.0
        %566 = vmatpush2.msra.mxu0 %v513
        %567 = vmatprep.subr.mxu0 0.0
        %568 = vmatpush2.msra.mxu0 %v512
        %569 = vmatprep.subr.mxu0 0.0
        %570 = vmatpush2.msra.mxu0 %v511
        %571 = vmatprep.subr.mxu0 0.0
        %572 = vmatpush2.msra.mxu0 %v510
        %573 = vmatprep.subr.mxu0 0.0
        %574 = vmatpush2.msra.mxu0 %v509
        %575 = vmatprep.subr.mxu0 0.0
        %576 = vmatpush2.msra.mxu0 %v508
        %577 = vmatprep.subr.mxu0 0.0
        %578 = vmatpush2.msra.mxu0 %v507
        %579 = vmatprep.subr.mxu0 0.0
        %580 = vmatpush2.msra.mxu0 %v506
        %581 = vmatprep.subr.mxu0 0.0
        %582 = vmatpush2.msra.mxu0 %v505
        %583 = vmatprep.subr.mxu0 0.0
        %584 = vmatpush2.msra.mxu0 %v504
        %585 = vmatprep.mubr.f32.mxu0 %v486
        %586 = vmatmul.mubr.f32.gmra.mxu0 %v484
        %v587 = vpop.f32.mrf.mxu0
        %v588 = vadd.f32 %v520, %v587
        %v589 = vpop.f32.mrf.mxu0
        %590 = vdwg.mxu0
        %v591 = vmax.f32 %v588, 0.0
        %v592 = vld [vmem:[#allocation6] sm:$0xff]
        %v593 = vld [vmem:[#allocation6 + $0x8] sm:$0xff]
        %v594 = vld [vmem:[#allocation6 + $0x10] sm:$0xff]
        %v595 = vld [vmem:[#allocation6 + $0x18] sm:$0xff]
        %v596 = vld [vmem:[#allocation6 + $0x20] sm:$0xff]
        %v597 = vld [vmem:[#allocation6 + $0x28] sm:$0xff]
        %v598 = vld [vmem:[#allocation6 + $0x30] sm:$0xff]
        %v599 = vld [vmem:[#allocation6 + $0x38] sm:$0xff]
        %v600 = vld [vmem:[#allocation6 + $0x40] sm:$0xff]
        %v601 = vld [vmem:[#allocation6 + $0x48] sm:$0xff]
        %v602 = vld [vmem:[#allocation6 + $0x50] sm:$0xff]
        %v603 = vld [vmem:[#allocation6 + $0x58] sm:$0xff]
        %v604 = vld [vmem:[#allocation6 + $0x60] sm:$0xff]
        %v605 = vld [vmem:[#allocation6 + $0x68] sm:$0xff]
        %v606 = vld [vmem:[#allocation6 + $0x70] sm:$0xff]
        %v607 = vld [vmem:[#allocation6 + $0x78] sm:$0xff]
        %v608 = vld [vmem:[#allocation9 + $0x2] ss:$0 sm:$0xff]
        %609 = vmatprep.subr.mxu0 0.0
        %610 = vmatpush1.msra.mxu0 %v607
        %611 = vmatprep.subr.mxu0 0.0
        %612 = vmatpush1.msra.mxu0 %v606
        %613 = vmatprep.subr.mxu0 0.0
        %614 = vmatpush1.msra.mxu0 %v605
        %615 = vmatprep.subr.mxu0 0.0
        %616 = vmatpush1.msra.mxu0 %v604
        %617 = vmatprep.subr.mxu0 0.0
        %618 = vmatpush1.msra.mxu0 %v603
        %619 = vmatprep.subr.mxu0 0.0
        %620 = vmatpush1.msra.mxu0 %v602
        %621 = vmatprep.subr.mxu0 0.0
        %622 = vmatpush1.msra.mxu0 %v601
        %623 = vmatprep.subr.mxu0 0.0
        %624 = vmatpush1.msra.mxu0 %v600
        %625 = vmatprep.subr.mxu0 0.0
        %626 = vmatpush1.msra.mxu0 %v599
        %627 = vmatprep.subr.mxu0 0.0
        %628 = vmatpush1.msra.mxu0 %v598
        %629 = vmatprep.subr.mxu0 0.0
        %630 = vmatpush1.msra.mxu0 %v597
        %631 = vmatprep.subr.mxu0 0.0
        %632 = vmatpush1.msra.mxu0 %v596
        %633 = vmatprep.subr.mxu0 0.0
        %634 = vmatpush1.msra.mxu0 %v595
        %635 = vmatprep.subr.mxu0 0.0
        %636 = vmatpush1.msra.mxu0 %v594
        %637 = vmatprep.subr.mxu0 0.0
        %638 = vmatpush1.msra.mxu0 %v593
        %639 = vmatprep.subr.mxu0 0.0
        %640 = vmatpush1.msra.mxu0 %v592
        %641 = vmatprep.subr.mxu0 0.0
        %642 = vmatpush2.msra.mxu0 0.0
        %643 = vmatprep.subr.mxu0 0.0
        %644 = vmatpush2.msra.mxu0 0.0
        %645 = vmatprep.subr.mxu0 0.0
        %646 = vmatpush2.msra.mxu0 0.0
        %647 = vmatprep.subr.mxu0 0.0
        %648 = vmatpush2.msra.mxu0 0.0
        %649 = vmatprep.subr.mxu0 0.0
        %650 = vmatpush2.msra.mxu0 0.0
        %651 = vmatprep.subr.mxu0 0.0
        %652 = vmatpush2.msra.mxu0 0.0
        %653 = vmatprep.subr.mxu0 0.0
        %654 = vmatpush2.msra.mxu0 0.0
        %655 = vmatprep.subr.mxu0 0.0
        %656 = vmatpush2.msra.mxu0 0.0
        %657 = vmatprep.subr.mxu0 0.0
        %658 = vmatpush2.msra.mxu0 0.0
        %659 = vmatprep.subr.mxu0 0.0
        %660 = vmatpush2.msra.mxu0 0.0
        %661 = vmatprep.subr.mxu0 0.0
        %662 = vmatpush2.msra.mxu0 0.0
        %663 = vmatprep.subr.mxu0 0.0
        %664 = vmatpush2.msra.mxu0 0.0
        %665 = vmatprep.subr.mxu0 0.0
        %666 = vmatpush2.msra.mxu0 0.0
        %667 = vmatprep.subr.mxu0 0.0
        %668 = vmatpush2.msra.mxu0 0.0
        %669 = vmatprep.subr.mxu0 0.0
        %670 = vmatpush2.msra.mxu0 0.0
        %671 = vmatprep.subr.mxu0 0.0
        %672 = vmatpush2.msra.mxu0 0.0
        %673 = vmatprep.mubr.f32.mxu0 0.0
        %674 = vmatmul.mubr.f32.gmra.mxu0 %v591
        %v675 = vpop.f32.mrf.mxu0
        %v676 = vadd.f32 %v608, %v675
        %v677 = vpop.f32.mrf.mxu0
        %678 = vdwg.mxu0
        %v679 = vmax.f32 %v676, 0.0
        %v680 = vld [vmem:[#allocation7] sm:$0xff]
        %v681 = vld [vmem:[#allocation7 + $0x8] sm:$0xff]
        %v682 = vld [vmem:[#allocation7 + $0x10] sm:$0xff]
        %v683 = vld [vmem:[#allocation7 + $0x18] sm:$0xff]
        %v684 = vld [vmem:[#allocation7 + $0x20] sm:$0xff]
        %v685 = vld [vmem:[#allocation7 + $0x28] sm:$0xff]
        %v686 = vld [vmem:[#allocation7 + $0x30] sm:$0xff]
        %v687 = vld [vmem:[#allocation7 + $0x38] sm:$0xff]
        %v688 = vld [vmem:[#allocation9 + $0x3] ss:$0 sm:$0xff]
        %vm689 = vcmask 523264
        %v691 = vsel %vm689, %v679, 0
        %693 = vmatprep.subr.mxu0 0.0
        %694 = vmatpush1.msra.mxu0 0.0
        %695 = vmatprep.subr.mxu0 0.0
        %696 = vmatpush1.msra.mxu0 0.0
        %697 = vmatprep.subr.mxu0 0.0
        %698 = vmatpush1.msra.mxu0 0.0
        %699 = vmatprep.subr.mxu0 0.0
        %700 = vmatpush1.msra.mxu0 0.0
        %701 = vmatprep.subr.mxu0 0.0
        %702 = vmatpush1.msra.mxu0 0.0
        %703 = vmatprep.subr.mxu0 0.0
        %704 = vmatpush1.msra.mxu0 0.0
        %705 = vmatprep.subr.mxu0 0.0
        %706 = vmatpush1.msra.mxu0 0.0
        %707 = vmatprep.subr.mxu0 0.0
        %708 = vmatpush1.msra.mxu0 0.0
        %709 = vmatprep.subr.mxu0 0.0
        %710 = vmatpush1.msra.mxu0 %v687
        %711 = vmatprep.subr.mxu0 0.0
        %712 = vmatpush1.msra.mxu0 %v686
        %713 = vmatprep.subr.mxu0 0.0
        %714 = vmatpush1.msra.mxu0 %v685
        %715 = vmatprep.subr.mxu0 0.0
        %716 = vmatpush1.msra.mxu0 %v684
        %717 = vmatprep.subr.mxu0 0.0
        %718 = vmatpush1.msra.mxu0 %v683
        %719 = vmatprep.subr.mxu0 0.0
        %720 = vmatpush1.msra.mxu0 %v682
        %721 = vmatprep.subr.mxu0 0.0
        %722 = vmatpush1.msra.mxu0 %v681
        %723 = vmatprep.subr.mxu0 0.0
        %724 = vmatpush1.msra.mxu0 %v680
        %725 = vmatprep.subr.mxu0 0.0
        %726 = vmatpush2.msra.mxu0 0.0
        %727 = vmatprep.subr.mxu0 0.0
        %728 = vmatpush2.msra.mxu0 0.0
        %729 = vmatprep.subr.mxu0 0.0
        %730 = vmatpush2.msra.mxu0 0.0
        %731 = vmatprep.subr.mxu0 0.0
        %732 = vmatpush2.msra.mxu0 0.0
        %733 = vmatprep.subr.mxu0 0.0
        %734 = vmatpush2.msra.mxu0 0.0
        %735 = vmatprep.subr.mxu0 0.0
        %736 = vmatpush2.msra.mxu0 0.0
        %737 = vmatprep.subr.mxu0 0.0
        %738 = vmatpush2.msra.mxu0 0.0
        %739 = vmatprep.subr.mxu0 0.0
        %740 = vmatpush2.msra.mxu0 0.0
        %741 = vmatprep.subr.mxu0 0.0
        %742 = vmatpush2.msra.mxu0 0.0
        %743 = vmatprep.subr.mxu0 0.0
        %744 = vmatpush2.msra.mxu0 0.0
        %745 = vmatprep.subr.mxu0 0.0
        %746 = vmatpush2.msra.mxu0 0.0
        %747 = vmatprep.subr.mxu0 0.0
        %748 = vmatpush2.msra.mxu0 0.0
        %749 = vmatprep.subr.mxu0 0.0
        %750 = vmatpush2.msra.mxu0 0.0
        %751 = vmatprep.subr.mxu0 0.0
        %752 = vmatpush2.msra.mxu0 0.0
        %753 = vmatprep.subr.mxu0 0.0
        %754 = vmatpush2.msra.mxu0 0.0
        %755 = vmatprep.subr.mxu0 0.0
        %756 = vmatpush2.msra.mxu0 0.0
        %757 = vmatprep.mubr.f32.mxu0 0.0
        %758 = vmatmul.mubr.f32.gmra.mxu0 %v691
        %v759 = vpop.f32.mrf.mxu0
        %v760 = vadd.f32 %v688, %v759
        %v761 = vpop.f32.mrf.mxu0
        %762 = vdwg.mxu0
        %v763 = vmax.f32 %v760, 0.0
        %v764 = vld [vmem:[%s5] sm:$0xff]
        %v765 = vld [vmem:[%s5 + $0x8] sm:$0xff]
        %v766 = vld [vmem:[%s5 + $0x10] sm:$0xff]
        %v767 = vld [vmem:[%s5 + $0x18] sm:$0xff]
        %v768 = vld [vmem:[#allocation9 + $0x4] ss:$0 sm:$0xff]
        %vm769 = vcmask 261120
        %v771 = vsel %vm769, %v763, 0
        %773 = vmatprep.subr.mxu0 0.0
        %774 = vmatpush1.msra.mxu0 0.0
        %775 = vmatprep.subr.mxu0 0.0
        %776 = vmatpush1.msra.mxu0 0.0
        %777 = vmatprep.subr.mxu0 0.0
        %778 = vmatpush1.msra.mxu0 0.0
        %779 = vmatprep.subr.mxu0 0.0
        %780 = vmatpush1.msra.mxu0 0.0
        %781 = vmatprep.subr.mxu0 0.0
        %782 = vmatpush1.msra.mxu0 0.0
        %783 = vmatprep.subr.mxu0 0.0
        %784 = vmatpush1.msra.mxu0 0.0
        %785 = vmatprep.subr.mxu0 0.0
        %786 = vmatpush1.msra.mxu0 0.0
        %787 = vmatprep.subr.mxu0 0.0
        %788 = vmatpush1.msra.mxu0 0.0
        %789 = vmatprep.subr.mxu0 0.0
        %790 = vmatpush1.msra.mxu0 0.0
        %791 = vmatprep.subr.mxu0 0.0
        %792 = vmatpush1.msra.mxu0 0.0
        %793 = vmatprep.subr.mxu0 0.0
        %794 = vmatpush1.msra.mxu0 0.0
        %795 = vmatprep.subr.mxu0 0.0
        %796 = vmatpush1.msra.mxu0 0.0
        %797 = vmatprep.subr.mxu0 0.0
        %798 = vmatpush1.msra.mxu0 %v767
        %799 = vmatprep.subr.mxu0 0.0
        %800 = vmatpush1.msra.mxu0 %v766
        %801 = vmatprep.subr.mxu0 0.0
        %802 = vmatpush1.msra.mxu0 %v765
        %803 = vmatprep.subr.mxu0 0.0
        %804 = vmatpush1.msra.mxu0 %v764
        %805 = vmatprep.subr.mxu0 0.0
        %806 = vmatpush2.msra.mxu0 0.0
        %807 = vmatprep.subr.mxu0 0.0
        %808 = vmatpush2.msra.mxu0 0.0
        %809 = vmatprep.subr.mxu0 0.0
        %810 = vmatpush2.msra.mxu0 0.0
        %811 = vmatprep.subr.mxu0 0.0
        %812 = vmatpush2.msra.mxu0 0.0
        %813 = vmatprep.subr.mxu0 0.0
        %814 = vmatpush2.msra.mxu0 0.0
        %815 = vmatprep.subr.mxu0 0.0
        %816 = vmatpush2.msra.mxu0 0.0
        %817 = vmatprep.subr.mxu0 0.0
        %818 = vmatpush2.msra.mxu0 0.0
        %819 = vmatprep.subr.mxu0 0.0
        %820 = vmatpush2.msra.mxu0 0.0
        %821 = vmatprep.subr.mxu0 0.0
        %822 = vmatpush2.msra.mxu0 0.0
        %823 = vmatprep.subr.mxu0 0.0
        %824 = vmatpush2.msra.mxu0 0.0
        %825 = vmatprep.subr.mxu0 0.0
        %826 = vmatpush2.msra.mxu0 0.0
        %827 = vmatprep.subr.mxu0 0.0
        %828 = vmatpush2.msra.mxu0 0.0
        %829 = vmatprep.subr.mxu0 0.0
        %830 = vmatpush2.msra.mxu0 0.0
        %831 = vmatprep.subr.mxu0 0.0
        %832 = vmatpush2.msra.mxu0 0.0
        %833 = vmatprep.subr.mxu0 0.0
        %834 = vmatpush2.msra.mxu0 0.0
        %835 = vmatprep.subr.mxu0 0.0
        %836 = vmatpush2.msra.mxu0 0.0
        %837 = vmatprep.mubr.f32.mxu0 0.0
        %838 = vmatmul.mubr.f32.gmra.mxu0 %v771
        %v839 = vpop.f32.mrf.mxu0
        %v840 = vadd.f32 %v768, %v839
        %v841 = vpop.f32.mrf.mxu0
        %842 = vdwg.mxu0
        %v843 = vmax.f32 %v840, 0.0
        %v844 = vld [vmem:[%s6] sm:$0xff]
        %v845 = vld [vmem:[%s6 + $0x8] sm:$0xff]
        %v846 = vld [vmem:[%s6 + $0x10] sm:$0xff]
        %v847 = vld [vmem:[%s6 + $0x18] sm:$0xff]
        %v848 = vld [vmem:[#allocation9 + $0x5] ss:$0 sm:$0xff]
        %v850 = vsel %vm769, %v843, 0
        %852 = vmatprep.subr.mxu0 0.0
        %853 = vmatpush1.msra.mxu0 0.0
        %854 = vmatprep.subr.mxu0 0.0
        %855 = vmatpush1.msra.mxu0 0.0
        %856 = vmatprep.subr.mxu0 0.0
        %857 = vmatpush1.msra.mxu0 0.0
        %858 = vmatprep.subr.mxu0 0.0
        %859 = vmatpush1.msra.mxu0 0.0
        %860 = vmatprep.subr.mxu0 0.0
        %861 = vmatpush1.msra.mxu0 0.0
        %862 = vmatprep.subr.mxu0 0.0
        %863 = vmatpush1.msra.mxu0 0.0
        %864 = vmatprep.subr.mxu0 0.0
        %865 = vmatpush1.msra.mxu0 0.0
        %866 = vmatprep.subr.mxu0 0.0
        %867 = vmatpush1.msra.mxu0 0.0
        %868 = vmatprep.subr.mxu0 0.0
        %869 = vmatpush1.msra.mxu0 0.0
        %870 = vmatprep.subr.mxu0 0.0
        %871 = vmatpush1.msra.mxu0 0.0
        %872 = vmatprep.subr.mxu0 0.0
        %873 = vmatpush1.msra.mxu0 0.0
        %874 = vmatprep.subr.mxu0 0.0
        %875 = vmatpush1.msra.mxu0 0.0
        %876 = vmatprep.subr.mxu0 0.0
        %877 = vmatpush1.msra.mxu0 %v847
        %878 = vmatprep.subr.mxu0 0.0
        %879 = vmatpush1.msra.mxu0 %v846
        %880 = vmatprep.subr.mxu0 0.0
        %881 = vmatpush1.msra.mxu0 %v845
        %882 = vmatprep.subr.mxu0 0.0
        %883 = vmatpush1.msra.mxu0 %v844
        %884 = vmatprep.subr.mxu0 0.0
        %885 = vmatpush2.msra.mxu0 0.0
        %886 = vmatprep.subr.mxu0 0.0
        %887 = vmatpush2.msra.mxu0 0.0
        %888 = vmatprep.subr.mxu0 0.0
        %889 = vmatpush2.msra.mxu0 0.0
        %890 = vmatprep.subr.mxu0 0.0
        %891 = vmatpush2.msra.mxu0 0.0
        %892 = vmatprep.subr.mxu0 0.0
        %893 = vmatpush2.msra.mxu0 0.0
        %894 = vmatprep.subr.mxu0 0.0
        %895 = vmatpush2.msra.mxu0 0.0
        %896 = vmatprep.subr.mxu0 0.0
        %897 = vmatpush2.msra.mxu0 0.0
        %898 = vmatprep.subr.mxu0 0.0
        %899 = vmatpush2.msra.mxu0 0.0
        %900 = vmatprep.subr.mxu0 0.0
        %901 = vmatpush2.msra.mxu0 0.0
        %902 = vmatprep.subr.mxu0 0.0
        %903 = vmatpush2.msra.mxu0 0.0
        %904 = vmatprep.subr.mxu0 0.0
        %905 = vmatpush2.msra.mxu0 0.0
        %906 = vmatprep.subr.mxu0 0.0
        %907 = vmatpush2.msra.mxu0 0.0
        %908 = vmatprep.subr.mxu0 0.0
        %909 = vmatpush2.msra.mxu0 0.0
        %910 = vmatprep.subr.mxu0 0.0
        %911 = vmatpush2.msra.mxu0 0.0
        %912 = vmatprep.subr.mxu0 0.0
        %913 = vmatpush2.msra.mxu0 0.0
        %914 = vmatprep.subr.mxu0 0.0
        %915 = vmatpush2.msra.mxu0 0.0
        %916 = vmatprep.mubr.f32.mxu0 0.0
        %917 = vmatmul.mubr.f32.gmra.mxu0 %v850
        %v918 = vpop.f32.mrf.mxu0
        %v919 = vadd.f32 %v848, %v918
        %v920 = vpop.f32.mrf.mxu0
        %921 = vdwg.mxu0
        %vm922 = vcmask 9216
        %923 = vst.msk [vmem:[%s371] sm:$0x3] %vm922, %v919
        %p924 = scmp.lt.s32.totalorder %s22, 1
        %s925 = scalar_select %p924, %s22, 1
        %s926 = smul.addr %s925, 2
        %s927 = scalar_lea.vmem %s8, %s926
        // Predicated region
        $region73: #{latent_discriminator_forward.1} parent=51 // pred_check
          %p928 = pneg %p213
        $region74: #{latent_discriminator_forward.1} parent=51 // pred_check_branch
          %930 = sbr.rel (%p928) target = $region76
        $region75: #{latent_discriminator_forward.1} parent=51 // pred_region
          _
        $region76: #{latent_discriminator_forward.1} parent=51 // pred_fallthru
          _
      $region52: #{latent_discriminator_forward.1} parent=5 // pred_fallthru
        _
      %p931 = scmp.le.s32.totalorder 2, %s17
      // Predicated region
      $region77: #{latent_discriminator_forward.1} parent=5 // pred_check
        %p932 = pneg %p931
      $region78: #{latent_discriminator_forward.1} parent=5 // pred_check_branch
        %934 = sbr.rel (%p932) target = $region80
      $region79: #{latent_discriminator_forward.1} parent=5 // pred_region
        %s935 = ssub.s32 %s17, 2
        // Predicated region
        $region81: #{latent_discriminator_forward.1} parent=79 // pred_check
          %p936 = pneg %p219
        $region82: #{latent_discriminator_forward.1} parent=79 // pred_check_branch
          %938 = sbr.rel (%p936) target = $region84
        $region83: #{latent_discriminator_forward.1} parent=79 // pred_region
          %p939 = scmp.lt.s32.totalorder %s23, 1
          %s940 = scalar_select %p939, %s23, 1
          %s941 = smul.addr %s940, 2
          %s942 = scalar_lea.vmem %s8, %s941
        $region84: #{latent_discriminator_forward.1} parent=79 // pred_fallthru
          _
      $region80: #{latent_discriminator_forward.1} parent=5 // pred_fallthru
        _
    $region6: #{latent_discriminator_forward.1} parent=1 // loop_footer
      %s21 = sadd.s32 1, %s17
    $region7: #{latent_discriminator_forward.1} parent=1 // loop_footer_branch
      %16 = sbr.rel target = $region3
    $region8: #{latent_discriminator_forward.1} parent=1 // loop_exit
      _
    %943 = vsyncpa [#allocation3], 1
    %s944 = scalar_lea.sflag [#allocation3], 1
    %945 = vsyncpa %s944, 1
    %946 = vsyncpa [#allocation5], 1
    %947 = vsyncpa [#allocation8], 1

</llo_original>
